<compile_context>
chip_gen: v6e
topology: v6e:2x2x1
jax: 0.10.0
libtpu: 0.0.40
codegen_flags: <defaults>
</compile_context>

<pallas_src>
import functools

import jax
import jax.numpy as jnp
from jax.experimental import pallas as pl
from jax.experimental.pallas import tpu as pltpu


def actor_kernel(x_ref, w1_ref, b1_ref, w2_ref, b2_ref, w3_ref, b3_ref, o_ref):
    """Fused 3-layer MLP + softmax on one batch tile; weights VMEM-resident."""
    x = x_ref[...]

    # Layer 1: Linear + ReLU (f32 operands, f32 accumulation).
    h1 = jnp.dot(x, w1_ref[...], preferred_element_type=jnp.float32) + b1_ref[...]
    h1 = jnp.maximum(h1, 0.0)

    # Layer 2: Linear + ReLU.
    h2 = jnp.dot(h1, w2_ref[...], preferred_element_type=jnp.float32) + b2_ref[...]
    h2 = jnp.maximum(h2, 0.0)

    # Layer 3: logits over the *unpadded* action dim (output block is (TB, A)).
    logits = jnp.dot(h2, w3_ref[...], preferred_element_type=jnp.float32) + b3_ref[...]

    # Numerically stable softmax; divide via EUP reciprocal (otherwise-idle slot).
    m = jnp.max(logits, axis=-1, keepdims=True)
    e = jnp.exp(logits - m)
    denom = jnp.sum(e, axis=-1, keepdims=True)
    o_ref[...] = (e * pl.reciprocal(denom, approx=True)).astype(o_ref.dtype)


def _round_up(x, m):
    return ((x + m - 1) // m) * m


def _pad_axis(a, axis, target):
    pad = target - a.shape[axis]
    if pad <= 0:
        return a
    widths = [(0, 0)] * a.ndim
    widths[axis] = (0, pad)
    return jnp.pad(a, widths)


@functools.partial(jax.jit, static_argnames=("block_b",))
def actor_forward(state, params, *, block_b=1024):
    """Fused Pallas Actor forward.

    state  : (B, state_dim) float32
    params : dict with w1 (S,H0), b1 (H0,) or (1,H0), w2 (H0,H1), b2, w3 (H1,A), b3
    returns: (B, A) float32 action probabilities
    """
    B, S = state.shape
    H0 = params["w1"].shape[1]
    H1 = params["w2"].shape[1]
    A = params["w3"].shape[1]

    # --- one-time weight prep (tiny arrays, no batch-sized copies) ----------
    # Zero-pad hidden dims to multiples of 128 so hidden matmuls are native
    # MXU width; padded activations stay 0 through ReLU and hit zero rows of
    # the next weight, so results are unchanged.  No-op when already aligned.
    H0p = _round_up(H0, 128)
    H1p = _round_up(H1, 128)
    w1 = _pad_axis(params["w1"].astype(jnp.float32), 1, H0p)
    b1 = _pad_axis(params["b1"].astype(jnp.float32).reshape(1, -1), 1, H0p)
    w2 = _pad_axis(_pad_axis(params["w2"].astype(jnp.float32), 0, H0p), 1, H1p)
    b2 = _pad_axis(params["b2"].astype(jnp.float32).reshape(1, -1), 1, H1p)
    w3 = _pad_axis(params["w3"].astype(jnp.float32), 0, H1p)
    b3 = params["b3"].astype(jnp.float32).reshape(1, -1)

    # --- batch tiling --------------------------------------------------------
    # TB is a multiple of 8 (or the whole batch when B <= 8).  Cap TB so the
    # grid has at least 2 steps whenever possible (both v7x TCs get work).
    block_b = max(8, _round_up(block_b, 8))
    if B <= 8:
        TB = B                                   # full-dim block, single step
    else:
        TB = min(block_b, _round_up(pl.cdiv(B, 2), 8), _round_up(B, 8))
    grid = (pl.cdiv(B, TB),)                     # partial edge block is masked

    resident = lambda i: (0, 0)                  # weights: same block every step

    out = pl.pallas_call(
        actor_kernel,
        out_shape=jax.ShapeDtypeStruct((B, A), jnp.float32),
        grid=grid,
        in_specs=[
            pl.BlockSpec((TB, S), lambda i: (i, 0)),      # streamed batch tile
            pl.BlockSpec((S, H0p), resident),
            pl.BlockSpec((1, H0p), resident),
            pl.BlockSpec((H0p, H1p), resident),
            pl.BlockSpec((1, H1p), resident),
            pl.BlockSpec((H1p, A), resident),
            pl.BlockSpec((1, A), resident),
        ],
        out_specs=pl.BlockSpec((TB, A), lambda i: (i, 0)),  # narrow, unpadded
        compiler_params=pltpu.CompilerParams(
            dimension_semantics=("parallel",),            # megacore shard on v7x
            vmem_limit_bytes=32 * 1024 * 1024,
        ),
    )(state.astype(jnp.float32), w1, b1, w2, b2, w3, b3)

    return out


def init_actor_params(key, state_dim, action_dim, hidden_layers=(256, 256)):
    """Deterministic PyTorch-style (Kaiming-uniform-ish) init."""
    dims = [state_dim, hidden_layers[0], hidden_layers[1], action_dim]
    params = {}
    for i in range(3):
        key, kw, kb = jax.random.split(key, 3)
        fan_in, fan_out = dims[i], dims[i + 1]
        bound = 1.0 / jnp.sqrt(jnp.float32(fan_in))
        params[f"w{i+1}"] = jax.random.uniform(
            kw, (fan_in, fan_out), jnp.float32, -bound, bound)
        params[f"b{i+1}"] = jax.random.uniform(
            kb, (1, fan_out), jnp.float32, -bound, bound)
    return params


def actor_reference(state, params):
    """Pure-JAX f32 reference matching the PyTorch module."""
    hp = jax.lax.Precision.HIGHEST
    h = jnp.dot(state, params["w1"], precision=hp) + params["b1"].reshape(1, -1)
    h = jnp.maximum(h, 0.0)
    h = jnp.dot(h, params["w2"], precision=hp) + params["b2"].reshape(1, -1)
    h = jnp.maximum(h, 0.0)
    logits = jnp.dot(h, params["w3"], precision=hp) + params["b3"].reshape(1, -1)
    return jax.nn.softmax(logits, axis=-1)


if __name__ == "__main__":
    key = jax.random.PRNGKey(0)
    k_params, k_state = jax.random.split(key)

    # Small shapes consistent with the module's forward.
    batch = 2
    state_dim = 16
    action_dim = 8
    hidden_layers = (32, 32)

    params = init_actor_params(k_params, state_dim, action_dim, hidden_layers)
    state = jax.random.normal(k_state, (batch, state_dim), jnp.float32)

    out = actor_forward(state, params)
    out = jax.block_until_ready(out)

    ref = actor_reference(state, params)
    assert out.shape == (batch, action_dim)
    assert jnp.allclose(jnp.sum(out, axis=-1), 1.0, atol=1e-3)
    assert jnp.allclose(out, ref, atol=1e-3, rtol=1e-3)

    print("KERNEL_OK")
</pallas_src>

<mosaic_0001>
module attributes {stable_mosaic.version = 11 : i64} {
  func.func @actor_kernel(%arg0: i32, %arg1: memref<2x16xf32, #tpu.memory_space<vmem>>, %arg2: memref<16x128xf32, #tpu.memory_space<vmem>>, %arg3: memref<1x128xf32, #tpu.memory_space<vmem>>, %arg4: memref<128x128xf32, #tpu.memory_space<vmem>>, %arg5: memref<1x128xf32, #tpu.memory_space<vmem>>, %arg6: memref<128x8xf32, #tpu.memory_space<vmem>>, %arg7: memref<1x8xf32, #tpu.memory_space<vmem>>, %arg8: memref<2x8xf32, #tpu.memory_space<vmem>>) attributes {dimension_semantics = [#tpu.dimension_semantics<parallel>], iteration_bounds = array<i64: 1>, scalar_prefetch = 0 : i64, scratch_operands = 0 : i64, tpu.core_type = #tpu.core_type<tc>, window_params = [{transform_indices = @transform_0, window_bounds = array<i64: 2, 16>}, {pipeline_mode = #tpu.pipeline_mode<synchronous>, transform_indices = @transform_1, window_bounds = array<i64: 16, 128>}, {pipeline_mode = #tpu.pipeline_mode<synchronous>, transform_indices = @transform_2, window_bounds = array<i64: 1, 128>}, {pipeline_mode = #tpu.pipeline_mode<synchronous>, transform_indices = @transform_3, window_bounds = array<i64: 128, 128>}, {pipeline_mode = #tpu.pipeline_mode<synchronous>, transform_indices = @transform_4, window_bounds = array<i64: 1, 128>}, {pipeline_mode = #tpu.pipeline_mode<synchronous>, transform_indices = @transform_5, window_bounds = array<i64: 128, 8>}, {pipeline_mode = #tpu.pipeline_mode<synchronous>, transform_indices = @transform_6, window_bounds = array<i64: 1, 8>}, {transform_indices = @transform_7, window_bounds = array<i64: 2, 8>}]} {
    %c0 = arith.constant 0 : index
    %c0_0 = arith.constant 0 : index
    %0 = vector.load %arg1[%c0, %c0_0] : memref<2x16xf32, #tpu.memory_space<vmem>>, vector<2x16xf32>
    %c0_1 = arith.constant 0 : index
    %c0_2 = arith.constant 0 : index
    %1 = vector.load %arg2[%c0_1, %c0_2] : memref<16x128xf32, #tpu.memory_space<vmem>>, vector<16x128xf32>
    %cst = arith.constant dense<0.000000e+00> : vector<2x128xf32>
    %2 = tpu.matmul %0, %1, %cst {dimension_numbers = #tpu.dot_dimension_numbers<[1], [0], [0], [1], [0, 0, 1, 1], [], []>} : vector<2x16xf32>, vector<16x128xf32>, vector<2x128xf32> -> vector<2x128xf32>
    %c0_3 = arith.constant 0 : index
    %c0_4 = arith.constant 0 : index
    %3 = vector.load %arg3[%c0_3, %c0_4] : memref<1x128xf32, #tpu.memory_space<vmem>>, vector<1x128xf32>
    %4 = vector.broadcast %3 : vector<1x128xf32> to vector<2x128xf32>
    %5 = arith.addf %2, %4 : vector<2x128xf32>
    %cst_5 = arith.constant 0.000000e+00 : f32
    %6 = vector.broadcast %cst_5 : f32 to vector<2x128xf32>
    %7 = arith.maximumf %5, %6 : vector<2x128xf32>
    %c0_6 = arith.constant 0 : index
    %c0_7 = arith.constant 0 : index
    %8 = vector.load %arg4[%c0_6, %c0_7] : memref<128x128xf32, #tpu.memory_space<vmem>>, vector<128x128xf32>
    %cst_8 = arith.constant dense<0.000000e+00> : vector<2x128xf32>
    %9 = tpu.matmul %7, %8, %cst_8 {dimension_numbers = #tpu.dot_dimension_numbers<[1], [0], [0], [1], [0, 0, 1, 1], [], []>} : vector<2x128xf32>, vector<128x128xf32>, vector<2x128xf32> -> vector<2x128xf32>
    %c0_9 = arith.constant 0 : index
    %c0_10 = arith.constant 0 : index
    %10 = vector.load %arg5[%c0_9, %c0_10] : memref<1x128xf32, #tpu.memory_space<vmem>>, vector<1x128xf32>
    %11 = vector.broadcast %10 : vector<1x128xf32> to vector<2x128xf32>
    %12 = arith.addf %9, %11 : vector<2x128xf32>
    %cst_11 = arith.constant 0.000000e+00 : f32
    %13 = vector.broadcast %cst_11 : f32 to vector<2x128xf32>
    %14 = arith.maximumf %12, %13 : vector<2x128xf32>
    %c0_12 = arith.constant 0 : index
    %c0_13 = arith.constant 0 : index
    %15 = vector.load %arg6[%c0_12, %c0_13] : memref<128x8xf32, #tpu.memory_space<vmem>>, vector<128x8xf32>
    %cst_14 = arith.constant dense<0.000000e+00> : vector<2x8xf32>
    %16 = tpu.matmul %14, %15, %cst_14 {dimension_numbers = #tpu.dot_dimension_numbers<[1], [0], [0], [1], [0, 0, 1, 1], [], []>} : vector<2x128xf32>, vector<128x8xf32>, vector<2x8xf32> -> vector<2x8xf32>
    %c0_15 = arith.constant 0 : index
    %c0_16 = arith.constant 0 : index
    %17 = vector.load %arg7[%c0_15, %c0_16] : memref<1x8xf32, #tpu.memory_space<vmem>>, vector<1x8xf32>
    %18 = vector.broadcast %17 : vector<1x8xf32> to vector<2x8xf32>
    %19 = arith.addf %16, %18 : vector<2x8xf32>
    %cst_17 = arith.constant dense<0xFF800000> : vector<2xf32>
    %20 = vector.multi_reduction <maximumf>, %19, %cst_17 [1] : vector<2x8xf32> to vector<2xf32>
    %21 = vector.shape_cast %20 : vector<2xf32> to vector<2x1xf32>
    %22 = vector.broadcast %21 : vector<2x1xf32> to vector<2x8xf32>
    %23 = arith.subf %19, %22 : vector<2x8xf32>
    %24 = math.exp %23 : vector<2x8xf32>
    %cst_18 = arith.constant dense<0.000000e+00> : vector<2xf32>
    %25 = vector.multi_reduction <add>, %24, %cst_18 [1] : vector<2x8xf32> to vector<2xf32>
    %26 = vector.shape_cast %25 : vector<2xf32> to vector<2x1xf32>
    %27 = tpu.reciprocal %26 {approx = true} : vector<2x1xf32> -> vector<2x1xf32>
    %28 = vector.broadcast %27 : vector<2x1xf32> to vector<2x8xf32>
    %29 = arith.mulf %24, %28 : vector<2x8xf32>
    %c0_19 = arith.constant 0 : index
    %c0_20 = arith.constant 0 : index
    %30 = vector.load %arg8[%c0_19, %c0_20] : memref<2x8xf32, #tpu.memory_space<vmem>>, vector<2x8xf32>
    tpu.vector_store %arg8[%c0_19, %c0_20], %29 {strides = array<i32>} : memref<2x8xf32, #tpu.memory_space<vmem>>, vector<2x8xf32>,
    return
  }
  func.func @transform_0(%arg0: i32) -> (i32, i32) {
    %c0_i32 = arith.constant 0 : i32
    %c0_i32_0 = arith.constant 0 : i32
    return %arg0, %c0_i32 : i32, i32
  }
  func.func @transform_1(%arg0: i32) -> (i32, i32) {
    %c0_i32 = arith.constant 0 : i32
    %c0_i32_0 = arith.constant 0 : i32
    %c0_i32_1 = arith.constant 0 : i32
    return %c0_i32, %c0_i32_0 : i32, i32
  }
  func.func @transform_2(%arg0: i32) -> (i32, i32) {
    %c0_i32 = arith.constant 0 : i32
    %c0_i32_0 = arith.constant 0 : i32
    %c0_i32_1 = arith.constant 0 : i32
    return %c0_i32, %c0_i32_0 : i32, i32
  }
  func.func @transform_3(%arg0: i32) -> (i32, i32) {
    %c0_i32 = arith.constant 0 : i32
    %c0_i32_0 = arith.constant 0 : i32
    %c0_i32_1 = arith.constant 0 : i32
    return %c0_i32, %c0_i32_0 : i32, i32
  }
  func.func @transform_4(%arg0: i32) -> (i32, i32) {
    %c0_i32 = arith.constant 0 : i32
    %c0_i32_0 = arith.constant 0 : i32
    %c0_i32_1 = arith.constant 0 : i32
    return %c0_i32, %c0_i32_0 : i32, i32
  }
  func.func @transform_5(%arg0: i32) -> (i32, i32) {
    %c0_i32 = arith.constant 0 : i32
    %c0_i32_0 = arith.constant 0 : i32
    %c0_i32_1 = arith.constant 0 : i32
    return %c0_i32, %c0_i32_0 : i32, i32
  }
  func.func @transform_6(%arg0: i32) -> (i32, i32) {
    %c0_i32 = arith.constant 0 : i32
    %c0_i32_0 = arith.constant 0 : i32
    %c0_i32_1 = arith.constant 0 : i32
    return %c0_i32, %c0_i32_0 : i32, i32
  }
  func.func @transform_7(%arg0: i32) -> (i32, i32) {
    %c0_i32 = arith.constant 0 : i32
    %c0_i32_0 = arith.constant 0 : i32
    return %arg0, %c0_i32 : i32, i32
  }
}

</mosaic_0001>

<llo_original>
// kernel: actor_forward.1
$region0: #{actor_forward.1}
  #allocation0 [shape = 'u32[]', space=smem, size = 0x4, offset = 0x4, fixed_abs, tag = 'smem constant byte address 0x4 - core index']
  #allocation1 [shape = 'u32[144,128]{1,0:T(1,128)}', space=vmem, size = 0x12000, scoped, tag = 'internal scratch']
  %s0 = inlined_call_operand.vmem [shape: f32[2,16], index: 0, kind: input, shape index: {}]
  %s1 = inlined_call_operand.vmem [shape: f32[16,128], index: 1, kind: input, shape index: {}]
  %s2 = inlined_call_operand.vmem [shape: f32[1,128], index: 2, kind: input, shape index: {}]
  %s3 = inlined_call_operand.vmem [shape: f32[128,128], index: 3, kind: input, shape index: {}]
  %s4 = inlined_call_operand.vmem [shape: f32[1,128], index: 4, kind: input, shape index: {}]
  %s5 = inlined_call_operand.vmem [shape: f32[128,8], index: 5, kind: input, shape index: {}]
  %s6 = inlined_call_operand.vmem [shape: f32[1,8], index: 6, kind: input, shape index: {}]
  %s7 = inlined_call_operand.hbm [shape: f32[2,8], index: 7, kind: output, shape index: {}]
  %s8 = sld [smem:[#allocation0]]
  $region38: #{actor_forward.1} parent=0
    _
  %s10 = ssub.s32 1, %s8
  %s11 = scalar_select 0, %s10, %s8
  $region1: #{actor_forward.1} parent=0
    #allocation2 [shape = 'u8[1024]{0}', space=vmem, size = 0x400, scoped, tag = 'output window, operand 0, single buffered']
    #allocation3 [shape = 's32[1]{0}', space=sflag, size = 0x4, scoped, tag = 'scoped memory for actor_forward.1']
    %12 = vsyncpa [#allocation3], 0
    // Predicated region
    $region2: #{actor_forward.1} parent=1 // pred_check
      _
    $region3: #{actor_forward.1} parent=1 // pred_check_branch
      %14 = sbr.rel (0) target = $region5
    $region4: #{actor_forward.1} parent=1 // pred_region
      _
    $region5: #{actor_forward.1} parent=1 // pred_fallthru
      _
    // Predicated region
    $region6: #{actor_forward.1} parent=1 // pred_check
      _
    $region7: #{actor_forward.1} parent=1 // pred_check_branch
      %16 = sbr.rel (0) target = $region9
    $region8: #{actor_forward.1} parent=1 // pred_region
      _
    $region9: #{actor_forward.1} parent=1 // pred_fallthru
      _
    // Predicated region
    $region10: #{actor_forward.1} parent=1 // pred_check
      _
    $region11: #{actor_forward.1} parent=1 // pred_check_branch
      %18 = sbr.rel (0) target = $region13
    $region12: #{actor_forward.1} parent=1 // pred_region
      _
    $region13: #{actor_forward.1} parent=1 // pred_fallthru
      _
    // Predicated region
    $region14: #{actor_forward.1} parent=1 // pred_check
      _
    $region15: #{actor_forward.1} parent=1 // pred_check_branch
      %20 = sbr.rel (0) target = $region17
    $region16: #{actor_forward.1} parent=1 // pred_region
      _
    $region17: #{actor_forward.1} parent=1 // pred_fallthru
      _
    // Predicated region
    $region18: #{actor_forward.1} parent=1 // pred_check
      _
    $region19: #{actor_forward.1} parent=1 // pred_check_branch
      %22 = sbr.rel (0) target = $region21
    $region20: #{actor_forward.1} parent=1 // pred_region
      _
    $region21: #{actor_forward.1} parent=1 // pred_fallthru
      _
    // Predicated region
    $region22: #{actor_forward.1} parent=1 // pred_check
      _
    $region23: #{actor_forward.1} parent=1 // pred_check_branch
      %24 = sbr.rel (0) target = $region25
    $region24: #{actor_forward.1} parent=1 // pred_region
      _
    $region25: #{actor_forward.1} parent=1 // pred_fallthru
      _
    // Predicated region
    $region26: #{actor_forward.1} parent=1 // pred_check
      _
    $region27: #{actor_forward.1} parent=1 // pred_check_branch
      %26 = sbr.rel (0) target = $region29
    $region28: #{actor_forward.1} parent=1 // pred_region
      _
    $region29: #{actor_forward.1} parent=1 // pred_fallthru
      _
    %v27 = vld [vmem:[%s0] sm:$0x3]
    %v28 = vld [vmem:[%s1] sm:$0xff]
    %v29 = vld [vmem:[%s1 + $0x8] sm:$0xff]
    %v30 = vld [vmem:[%s2] sm:$0x1]
    %v32 = vlaneseq
    %v33 = vshrl.u32 %v32, 7
    %v34 = vsub.s32 0, %v33
    %v35 = vrot.slane %v30, %v34
    %vm37 = vcmask 130048
    %v39 = vsel %vm37, %v27, 0
    %41 = vmatprep.subr.mxu0 0.0
    %42 = vmatpush1.msra.mxu0 0.0
    %43 = vmatprep.subr.mxu0 0.0
    %44 = vmatpush1.msra.mxu0 0.0
    %45 = vmatprep.subr.mxu0 0.0
    %46 = vmatpush1.msra.mxu0 0.0
    %47 = vmatprep.subr.mxu0 0.0
    %48 = vmatpush1.msra.mxu0 0.0
    %49 = vmatprep.subr.mxu0 0.0
    %50 = vmatpush1.msra.mxu0 0.0
    %51 = vmatprep.subr.mxu0 0.0
    %52 = vmatpush1.msra.mxu0 0.0
    %53 = vmatprep.subr.mxu0 0.0
    %54 = vmatpush1.msra.mxu0 0.0
    %55 = vmatprep.subr.mxu0 0.0
    %56 = vmatpush1.msra.mxu0 0.0
    %57 = vmatprep.subr.mxu0 0.0
    %58 = vmatpush1.msra.mxu0 0.0
    %59 = vmatprep.subr.mxu0 0.0
    %60 = vmatpush1.msra.mxu0 0.0
    %61 = vmatprep.subr.mxu0 0.0
    %62 = vmatpush1.msra.mxu0 0.0
    %63 = vmatprep.subr.mxu0 0.0
    %64 = vmatpush1.msra.mxu0 0.0
    %65 = vmatprep.subr.mxu0 0.0
    %66 = vmatpush1.msra.mxu0 0.0
    %67 = vmatprep.subr.mxu0 0.0
    %68 = vmatpush1.msra.mxu0 0.0
    %69 = vmatprep.subr.mxu0 0.0
    %70 = vmatpush1.msra.mxu0 %v29
    %71 = vmatprep.subr.mxu0 0.0
    %72 = vmatpush1.msra.mxu0 %v28
    %73 = vmatprep.subr.mxu0 0.0
    %74 = vmatpush2.msra.mxu0 0.0
    %75 = vmatprep.subr.mxu0 0.0
    %76 = vmatpush2.msra.mxu0 0.0
    %77 = vmatprep.subr.mxu0 0.0
    %78 = vmatpush2.msra.mxu0 0.0
    %79 = vmatprep.subr.mxu0 0.0
    %80 = vmatpush2.msra.mxu0 0.0
    %81 = vmatprep.subr.mxu0 0.0
    %82 = vmatpush2.msra.mxu0 0.0
    %83 = vmatprep.subr.mxu0 0.0
    %84 = vmatpush2.msra.mxu0 0.0
    %85 = vmatprep.subr.mxu0 0.0
    %86 = vmatpush2.msra.mxu0 0.0
    %87 = vmatprep.subr.mxu0 0.0
    %88 = vmatpush2.msra.mxu0 0.0
    %89 = vmatprep.subr.mxu0 0.0
    %90 = vmatpush2.msra.mxu0 0.0
    %91 = vmatprep.subr.mxu0 0.0
    %92 = vmatpush2.msra.mxu0 0.0
    %93 = vmatprep.subr.mxu0 0.0
    %94 = vmatpush2.msra.mxu0 0.0
    %95 = vmatprep.subr.mxu0 0.0
    %96 = vmatpush2.msra.mxu0 0.0
    %97 = vmatprep.subr.mxu0 0.0
    %98 = vmatpush2.msra.mxu0 0.0
    %99 = vmatprep.subr.mxu0 0.0
    %100 = vmatpush2.msra.mxu0 0.0
    %101 = vmatprep.subr.mxu0 0.0
    %102 = vmatpush2.msra.mxu0 0.0
    %103 = vmatprep.subr.mxu0 0.0
    %104 = vmatpush2.msra.mxu0 0.0
    %105 = vmatprep.mubr.f32.mxu0 0.0
    %106 = vmatmul.mubr.f32.gmra.mxu0 %v39
    %v107 = vpop.f32.mrf.mxu0
    %v108 = vadd.f32 %v35, %v107
    %v109 = vpop.f32.mrf.mxu0
    %110 = vdwg.mxu0
    %v111 = vmax.f32 %v108, 0.0
    %v112 = vld [vmem:[%s3] sm:$0xff]
    %v113 = vld [vmem:[%s3 + $0x8] sm:$0xff]
    %v114 = vld [vmem:[%s3 + $0x10] sm:$0xff]
    %v115 = vld [vmem:[%s3 + $0x18] sm:$0xff]
    %v116 = vld [vmem:[%s3 + $0x20] sm:$0xff]
    %v117 = vld [vmem:[%s3 + $0x28] sm:$0xff]
    %v118 = vld [vmem:[%s3 + $0x30] sm:$0xff]
    %v119 = vld [vmem:[%s3 + $0x38] sm:$0xff]
    %v120 = vld [vmem:[%s3 + $0x40] sm:$0xff]
    %v121 = vld [vmem:[%s3 + $0x48] sm:$0xff]
    %v122 = vld [vmem:[%s3 + $0x50] sm:$0xff]
    %v123 = vld [vmem:[%s3 + $0x58] sm:$0xff]
    %v124 = vld [vmem:[%s3 + $0x60] sm:$0xff]
    %v125 = vld [vmem:[%s3 + $0x68] sm:$0xff]
    %v126 = vld [vmem:[%s3 + $0x70] sm:$0xff]
    %v127 = vld [vmem:[%s3 + $0x78] sm:$0xff]
    %v128 = vld [vmem:[%s4] sm:$0x1]
    %v130 = vlaneseq
    %v131 = vshrl.u32 %v130, 7
    %v132 = vsub.s32 0, %v131
    %v133 = vrot.slane %v128, %v132
    %135 = vmatprep.subr.mxu0 0.0
    %136 = vmatpush1.msra.mxu0 %v127
    %137 = vmatprep.subr.mxu0 0.0
    %138 = vmatpush1.msra.mxu0 %v126
    %139 = vmatprep.subr.mxu0 0.0
    %140 = vmatpush1.msra.mxu0 %v125
    %141 = vmatprep.subr.mxu0 0.0
    %142 = vmatpush1.msra.mxu0 %v124
    %143 = vmatprep.subr.mxu0 0.0
    %144 = vmatpush1.msra.mxu0 %v123
    %145 = vmatprep.subr.mxu0 0.0
    %146 = vmatpush1.msra.mxu0 %v122
    %147 = vmatprep.subr.mxu0 0.0
    %148 = vmatpush1.msra.mxu0 %v121
    %149 = vmatprep.subr.mxu0 0.0
    %150 = vmatpush1.msra.mxu0 %v120
    %151 = vmatprep.subr.mxu0 0.0
    %152 = vmatpush1.msra.mxu0 %v119
    %153 = vmatprep.subr.mxu0 0.0
    %154 = vmatpush1.msra.mxu0 %v118
    %155 = vmatprep.subr.mxu0 0.0
    %156 = vmatpush1.msra.mxu0 %v117
    %157 = vmatprep.subr.mxu0 0.0
    %158 = vmatpush1.msra.mxu0 %v116
    %159 = vmatprep.subr.mxu0 0.0
    %160 = vmatpush1.msra.mxu0 %v115
    %161 = vmatprep.subr.mxu0 0.0
    %162 = vmatpush1.msra.mxu0 %v114
    %163 = vmatprep.subr.mxu0 0.0
    %164 = vmatpush1.msra.mxu0 %v113
    %165 = vmatprep.subr.mxu0 0.0
    %166 = vmatpush1.msra.mxu0 %v112
    %167 = vmatprep.subr.mxu0 0.0
    %168 = vmatpush2.msra.mxu0 0.0
    %169 = vmatprep.subr.mxu0 0.0
    %170 = vmatpush2.msra.mxu0 0.0
    %171 = vmatprep.subr.mxu0 0.0
    %172 = vmatpush2.msra.mxu0 0.0
    %173 = vmatprep.subr.mxu0 0.0
    %174 = vmatpush2.msra.mxu0 0.0
    %175 = vmatprep.subr.mxu0 0.0
    %176 = vmatpush2.msra.mxu0 0.0
    %177 = vmatprep.subr.mxu0 0.0
    %178 = vmatpush2.msra.mxu0 0.0
    %179 = vmatprep.subr.mxu0 0.0
    %180 = vmatpush2.msra.mxu0 0.0
    %181 = vmatprep.subr.mxu0 0.0
    %182 = vmatpush2.msra.mxu0 0.0
    %183 = vmatprep.subr.mxu0 0.0
    %184 = vmatpush2.msra.mxu0 0.0
    %185 = vmatprep.subr.mxu0 0.0
    %186 = vmatpush2.msra.mxu0 0.0
    %187 = vmatprep.subr.mxu0 0.0
    %188 = vmatpush2.msra.mxu0 0.0
    %189 = vmatprep.subr.mxu0 0.0
    %190 = vmatpush2.msra.mxu0 0.0
    %191 = vmatprep.subr.mxu0 0.0
    %192 = vmatpush2.msra.mxu0 0.0
    %193 = vmatprep.subr.mxu0 0.0
    %194 = vmatpush2.msra.mxu0 0.0
    %195 = vmatprep.subr.mxu0 0.0
    %196 = vmatpush2.msra.mxu0 0.0
    %197 = vmatprep.subr.mxu0 0.0
    %198 = vmatpush2.msra.mxu0 0.0
    %199 = vmatprep.mubr.f32.mxu0 0.0
    %200 = vmatmul.mubr.f32.gmra.mxu0 %v111
    %v201 = vpop.f32.mrf.mxu0
    %v202 = vadd.f32 %v133, %v201
    %v203 = vpop.f32.mrf.mxu0
    %204 = vdwg.mxu0
    %v205 = vmax.f32 %v202, 0.0
    %v206 = vld [vmem:[%s5] sm:$0xff]
    %v207 = vld [vmem:[%s5 + $0x8] sm:$0xff]
    %v208 = vld [vmem:[%s5 + $0x10] sm:$0xff]
    %v209 = vld [vmem:[%s5 + $0x18] sm:$0xff]
    %v210 = vld [vmem:[%s5 + $0x20] sm:$0xff]
    %v211 = vld [vmem:[%s5 + $0x28] sm:$0xff]
    %v212 = vld [vmem:[%s5 + $0x30] sm:$0xff]
    %v213 = vld [vmem:[%s5 + $0x38] sm:$0xff]
    %v214 = vld [vmem:[%s5 + $0x40] sm:$0xff]
    %v215 = vld [vmem:[%s5 + $0x48] sm:$0xff]
    %v216 = vld [vmem:[%s5 + $0x50] sm:$0xff]
    %v217 = vld [vmem:[%s5 + $0x58] sm:$0xff]
    %v218 = vld [vmem:[%s5 + $0x60] sm:$0xff]
    %v219 = vld [vmem:[%s5 + $0x68] sm:$0xff]
    %v220 = vld [vmem:[%s5 + $0x70] sm:$0xff]
    %v221 = vld [vmem:[%s5 + $0x78] sm:$0xff]
    %v222 = vld [vmem:[%s6] sm:$0x1]
    %v224 = vlaneseq
    %v225 = vshrl.u32 %v224, 7
    %v226 = vsub.s32 0, %v225
    %v227 = vrot.slane %v222, %v226
    %229 = vmatprep.subr.mxu0 0.0
    %230 = vmatpush1.msra.mxu0 %v221
    %231 = vmatprep.subr.mxu0 0.0
    %232 = vmatpush1.msra.mxu0 %v220
    %233 = vmatprep.subr.mxu0 0.0
    %234 = vmatpush1.msra.mxu0 %v219
    %235 = vmatprep.subr.mxu0 0.0
    %236 = vmatpush1.msra.mxu0 %v218
    %237 = vmatprep.subr.mxu0 0.0
    %238 = vmatpush1.msra.mxu0 %v217
    %239 = vmatprep.subr.mxu0 0.0
    %240 = vmatpush1.msra.mxu0 %v216
    %241 = vmatprep.subr.mxu0 0.0
    %242 = vmatpush1.msra.mxu0 %v215
    %243 = vmatprep.subr.mxu0 0.0
    %244 = vmatpush1.msra.mxu0 %v214
    %245 = vmatprep.subr.mxu0 0.0
    %246 = vmatpush1.msra.mxu0 %v213
    %247 = vmatprep.subr.mxu0 0.0
    %248 = vmatpush1.msra.mxu0 %v212
    %249 = vmatprep.subr.mxu0 0.0
    %250 = vmatpush1.msra.mxu0 %v211
    %251 = vmatprep.subr.mxu0 0.0
    %252 = vmatpush1.msra.mxu0 %v210
    %253 = vmatprep.subr.mxu0 0.0
    %254 = vmatpush1.msra.mxu0 %v209
    %255 = vmatprep.subr.mxu0 0.0
    %256 = vmatpush1.msra.mxu0 %v208
    %257 = vmatprep.subr.mxu0 0.0
    %258 = vmatpush1.msra.mxu0 %v207
    %259 = vmatprep.subr.mxu0 0.0
    %260 = vmatpush1.msra.mxu0 %v206
    %261 = vmatprep.subr.mxu0 0.0
    %262 = vmatpush2.msra.mxu0 0.0
    %263 = vmatprep.subr.mxu0 0.0
    %264 = vmatpush2.msra.mxu0 0.0
    %265 = vmatprep.subr.mxu0 0.0
    %266 = vmatpush2.msra.mxu0 0.0
    %267 = vmatprep.subr.mxu0 0.0
    %268 = vmatpush2.msra.mxu0 0.0
    %269 = vmatprep.subr.mxu0 0.0
    %270 = vmatpush2.msra.mxu0 0.0
    %271 = vmatprep.subr.mxu0 0.0
    %272 = vmatpush2.msra.mxu0 0.0
    %273 = vmatprep.subr.mxu0 0.0
    %274 = vmatpush2.msra.mxu0 0.0
    %275 = vmatprep.subr.mxu0 0.0
    %276 = vmatpush2.msra.mxu0 0.0
    %277 = vmatprep.subr.mxu0 0.0
    %278 = vmatpush2.msra.mxu0 0.0
    %279 = vmatprep.subr.mxu0 0.0
    %280 = vmatpush2.msra.mxu0 0.0
    %281 = vmatprep.subr.mxu0 0.0
    %282 = vmatpush2.msra.mxu0 0.0
    %283 = vmatprep.subr.mxu0 0.0
    %284 = vmatpush2.msra.mxu0 0.0
    %285 = vmatprep.subr.mxu0 0.0
    %286 = vmatpush2.msra.mxu0 0.0
    %287 = vmatprep.subr.mxu0 0.0
    %288 = vmatpush2.msra.mxu0 0.0
    %289 = vmatprep.subr.mxu0 0.0
    %290 = vmatpush2.msra.mxu0 0.0
    %291 = vmatprep.subr.mxu0 0.0
    %292 = vmatpush2.msra.mxu0 0.0
    %293 = vmatprep.mubr.f32.mxu0 0.0
    %294 = vmatmul.mubr.f32.gmra.mxu0 %v205
    %v295 = vpop.f32.mrf.mxu0
    %v296 = vadd.f32 %v227, %v295
    %v297 = vpop.f32.mrf.mxu0
    %298 = vdwg.mxu0
    %vm299 = vcmask 58368
    %v300 = vsel %vm299, %v296, -inf
    %301 = vmax.xlane.f32.xlu0 %v300
    %v302 = vpop.xlane.xlu0 %301
    %v303 = vsub.f32 %v296, %v302
    %v304 = vmul.f32 %v303, 1.442695
    %v305 = vpow.pop %v304
    %v306 = vsel %vm299, %v305, 0.0
    %307 = vadd.xlane.f32.xlu0 %v306
    %v308 = vpop.xlane.xlu0 %307
    %v309 = vrcp.pop %v308
    %v310 = vmul.f32 %v305, %v309
    %311 = vst.msk [vmem:[#allocation2] sm:$0x3] %vm299, %v310
    // Predicated region
    $region30: #{actor_forward.1} parent=1 // pred_check
      _
    $region31: #{actor_forward.1} parent=1 // pred_check_branch
      %313 = sbr.rel (0) target = $region33
    $region32: #{actor_forward.1} parent=1 // pred_region
      %s315 = ssub.s32 32, 32
      %316 = vsyncadd [#allocation3], %s315
      %s318 = sshll.u32 [#allocation2], 4
      %s319 = int_to_ptr.vmem [resolvable:$true] %s318
      %321 = dma.vmem_to_hbm [thread:$0]  %s319, 32, %s7, [#allocation3]
    $region33: #{actor_forward.1} parent=1 // pred_fallthru
      _
    // Predicated region
    $region34: #{actor_forward.1} parent=1 // pred_check
      _
    $region35: #{actor_forward.1} parent=1 // pred_check_branch
      %323 = sbr.rel (0) target = $region37
    $region36: #{actor_forward.1} parent=1 // pred_region
      %324 = dma.done [#allocation3], 32
    $region37: #{actor_forward.1} parent=1 // pred_fallthru
      _
    %325 = vsyncpa [#allocation3], 1

</llo_original>
